<compile_context>
chip_gen: v6e
topology: v6e:2x2x1
jax: 0.10.0
libtpu: 0.0.40
codegen_flags: <defaults>
</compile_context>

<pallas_src>
import functools

import jax
import jax.numpy as jnp
from jax.experimental import pallas as pl
from jax.experimental.pallas import tpu as pltpu

# model_config (synthetic, small)
ENC_HIDDEN = 32      # transformer.encoder_hidden
FILTER     = 32      # variance_predictor.filter_size
KERNEL     = 3       # variance_predictor.kernel_size
PAD1       = (KERNEL - 1) // 2   # conv1d_1 padding
PAD2       = 1                   # conv1d_2 padding (hard-coded to 1 in the module)
LN_EPS     = 1e-5
ROWS_TARGET = 512    # target rows (MXU M dimension) per grid step


def _conv1d_fused(x, w_ref, b_row, t_col, seq_len, pad):
    """'Same' 1-D conv over flattened sequence rows, all taps fused in one matmul.

    x:      [R, Cin] f32, R = Bt*T rows (Bt sequences laid out contiguously)
    w_ref:  [k*Cin, Cout] fused tap weights (tap-major)
    b_row:  [1, Cout]
    t_col:  [R, 1] int32 time index of every row within its sequence
    Returns [R, Cout] f32.
    """
    R, cin = x.shape
    k = w_ref.shape[0] // cin
    parts = []
    for j in range(k):                       # static, tiny unroll (k = 3)
        s = j - pad                          # y[t] += x[t + s] @ w[j]
        if s == 0:
            parts.append(x)
        else:
            rolled = pltpu.roll(x, shift=(-s) % R, axis=0)      # XLU, free-ish
            # zero rows whose source is outside this sequence (zero padding; also
            # prevents taps leaking between adjacent sequences within the block)
            valid = (t_col + s >= 0) & (t_col + s < seq_len)
            parts.append(jnp.where(valid, rolled, 0.0))
    xk = jnp.concatenate(parts, axis=-1)     # [R, k*Cin]
    y = jnp.dot(xk, w_ref[...], preferred_element_type=jnp.float32)
    return y + b_row


def _layer_norm(h, g_row, be_row):
    mu = jnp.mean(h, axis=-1, keepdims=True)
    var = jnp.mean((h - mu) ** 2, axis=-1, keepdims=True)
    return (h - mu) * jax.lax.rsqrt(var + LN_EPS) * g_row + be_row


def _vp_kernel(lens_ref,                     # scalar prefetch: [B_pad] int32 (SMEM)
               x_ref,                        # [R, H]
               w1_ref, b1_ref, g1_ref, be1_ref,
               w2_ref, b2_ref, g2_ref, be2_ref,
               w3_ref, b3_ref,
               out_ref,                      # [Bt, T]
               *, seq_len):
    blk = pl.program_id(0)
    bt, t_dim = out_ref.shape
    x = x_ref[...]                                            # [R, H] f32
    R = x.shape[0]

    # time-within-sequence of every row (hoisted once, reused by both convs)
    row = jax.lax.broadcasted_iota(jnp.int32, (R, 1), 0)
    t_col = row % seq_len

    # conv1d_1 -> relu_1 -> layer_norm_1 -> dropout_1(identity)
    h = _conv1d_fused(x, w1_ref, b1_ref[...], t_col, seq_len, PAD1)     # [R, F]
    h = jnp.maximum(h, 0.0)
    h = _layer_norm(h, g1_ref[...], be1_ref[...])
    # TODO(synk): nn.Dropout (training-mode stochastic masking) not implemented; identity (eval).

    # conv1d_2 -> relu_2 -> layer_norm_2 -> dropout_2(identity)
    h = _conv1d_fused(h, w2_ref, b2_ref[...], t_col, seq_len, PAD2)     # [R, F]
    h = jnp.maximum(h, 0.0)
    h = _layer_norm(h, g2_ref[...], be2_ref[...])

    # linear_layer (F -> 1): VPU multiply + lane reduce (no wasteful N=1 MXU pass),
    # producing [Bt, T] so the HBM store is lane-dense along T.
    h3 = h.reshape(bt, t_dim, h.shape[-1])                    # split at sublane-aligned boundary
    out2d = jnp.sum(h3 * w3_ref[...], axis=-1) + b3_ref[...]  # [Bt, T]

    # masked_fill(mask, 0.0): rebuild the padding mask in-kernel from per-sequence lengths.
    t_iota = jax.lax.broadcasted_iota(jnp.int32, (bt, t_dim), 1)
    b_iota = jax.lax.broadcasted_iota(jnp.int32, (bt, t_dim), 0)
    len_mat = jnp.zeros((bt, t_dim), jnp.int32)
    for bb in range(bt):                                      # static unroll, cheap VPU selects
        len_mat = jnp.where(b_iota == bb, lens_ref[blk * bt + bb], len_mat)
    out2d = jnp.where(t_iota >= len_mat, 0.0, out2d)

    out_ref[...] = out2d.astype(out_ref.dtype)


def _pick_bt(batch, seq_len, rows_target):
    """Sequences per grid step: aim for rows_target rows, keep blocks sublane-aligned."""
    bt = max(1, rows_target // seq_len)
    if bt >= batch:
        return batch                       # single / full-batch blocks
    return max(8, (bt // 8) * 8)           # Bt < B must be a multiple of 8 (sublane tiling)


def variance_predictor(x, mask, params, *, rows_target=ROWS_TARGET):
    """x: [B, T, H] f32, mask: [B, T] bool (True = padded position) -> [B, T] f32.

    The mask is assumed to be the standard FastSpeech2 suffix padding mask; it is converted
    to per-sequence lengths (passed via scalar prefetch) and rebuilt in-kernel from an iota.
    """
    B, T, H = x.shape
    k = params["w1"].shape[0]
    Fsz = params["w1"].shape[2]

    bt = _pick_bt(B, T, rows_target)
    b_pad = ((B + bt - 1) // bt) * bt
    nblk = b_pad // bt
    rows = bt * T                                  # rows per grid step (multiple of 8)

    # per-sequence valid lengths; padded batches get length 0 (fully masked -> zeros)
    lengths = jnp.sum(jnp.logical_not(mask), axis=-1).astype(jnp.int32)
    if b_pad != B:
        x = jnp.pad(x, ((0, b_pad - B), (0, 0), (0, 0)))
        lengths = jnp.pad(lengths, (0, b_pad - B))
    x_flat = x.reshape(b_pad * T, H)

    # fuse conv taps host-side: [k, Cin, Cout] -> [k*Cin, Cout]; linear weight -> [1, F] row
    w1f = params["w1"].reshape(k * H, Fsz)
    w2f = params["w2"].reshape(k * Fsz, Fsz)
    w3r = params["w3"].reshape(1, Fsz)

    def full(shape):
        return pl.BlockSpec(shape, lambda i, lens: (0,) * len(shape))

    grid_spec = pltpu.PrefetchScalarGridSpec(
        num_scalar_prefetch=1,                      # lengths -> SMEM
        grid=(nblk,),
        in_specs=[
            pl.BlockSpec((rows, H), lambda i, lens: (i, 0)),   # x rows, one block per step
            full((k * H, Fsz)),       # w1 fused
            full((1, Fsz)),           # b1
            full((1, Fsz)),           # gamma1
            full((1, Fsz)),           # beta1
            full((k * Fsz, Fsz)),     # w2 fused
            full((1, Fsz)),           # b2
            full((1, Fsz)),           # gamma2
            full((1, Fsz)),           # beta2
            full((1, Fsz)),           # w3 row
            full((1, 1)),             # b3
        ],
        out_specs=pl.BlockSpec((bt, T), lambda i, lens: (i, 0)),
    )

    out = pl.pallas_call(
        functools.partial(_vp_kernel, seq_len=T),
        out_shape=jax.ShapeDtypeStruct((b_pad, T), jnp.float32),
        grid_spec=grid_spec,
        compiler_params=pltpu.CompilerParams(
            dimension_semantics=("parallel",),      # independent row blocks (v7x: 2 TCs)
        ),
    )(lengths, x_flat,
      w1f, params["b1"].reshape(1, -1),
      params["g1"].reshape(1, -1), params["be1"].reshape(1, -1),
      w2f, params["b2"].reshape(1, -1),
      params["g2"].reshape(1, -1), params["be2"].reshape(1, -1),
      w3r, params["b3"].reshape(1, 1))
    return out[:B]


def reference(x, mask, params):
    """Pure-JAX reference of the same math for a correctness check."""
    def conv(h, w, b, pad):
        k = w.shape[0]
        T = h.shape[1]
        hp = jnp.pad(h, ((0, 0), (pad, pad), (0, 0)))
        acc = jnp.zeros(h.shape[:2] + (w.shape[2],), jnp.float32)
        for j in range(k):
            acc = acc + jnp.einsum("btc,cf->btf", hp[:, j:j + T, :], w[j])
        return acc + b

    def ln(h, g, be):
        mu = h.mean(-1, keepdims=True)
        var = ((h - mu) ** 2).mean(-1, keepdims=True)
        return (h - mu) * jax.lax.rsqrt(var + LN_EPS) * g + be

    h = ln(jnp.maximum(conv(x, params["w1"], params["b1"], PAD1), 0.0),
           params["g1"], params["be1"])
    h = ln(jnp.maximum(conv(h, params["w2"], params["b2"], PAD2), 0.0),
           params["g2"], params["be2"])
    out = (jnp.einsum("btf,fo->bto", h, params["w3"]) + params["b3"])[..., 0]
    return jnp.where(mask, 0.0, out)


def init_params(key):
    ks = jax.random.split(key, 6)
    scale1 = 1.0 / jnp.sqrt(ENC_HIDDEN * KERNEL)
    scale2 = 1.0 / jnp.sqrt(FILTER * KERNEL)
    scale3 = 1.0 / jnp.sqrt(FILTER)
    return {
        "w1": jax.random.uniform(ks[0], (KERNEL, ENC_HIDDEN, FILTER), jnp.float32,
                                 -scale1, scale1),
        "b1": jax.random.uniform(ks[1], (FILTER,), jnp.float32, -scale1, scale1),
        "g1": jnp.ones((FILTER,), jnp.float32),
        "be1": jnp.zeros((FILTER,), jnp.float32),
        "w2": jax.random.uniform(ks[2], (KERNEL, FILTER, FILTER), jnp.float32,
                                 -scale2, scale2),
        "b2": jax.random.uniform(ks[3], (FILTER,), jnp.float32, -scale2, scale2),
        "g2": jnp.ones((FILTER,), jnp.float32),
        "be2": jnp.zeros((FILTER,), jnp.float32),
        "w3": jax.random.uniform(ks[4], (FILTER, 1), jnp.float32, -scale3, scale3),
        "b3": jax.random.uniform(ks[5], (1,), jnp.float32, -scale3, scale3),
    }


if __name__ == "__main__":
    key = jax.random.PRNGKey(0)
    kx, kp, kx2, kl2 = jax.random.split(key, 4)
    params = init_params(kp)

    # --- small test (B=2, T=8): single grid step, full-batch block ---
    B, T = 2, 8
    x = jax.random.normal(kx, (B, T, ENC_HIDDEN), jnp.float32)
    lengths = jnp.array([8, 5], jnp.int32)            # mask=True marks padded positions
    mask = jnp.arange(T)[None, :] >= lengths[:, None]  # [B, T] bool
    out = jax.block_until_ready(variance_predictor(x, mask, params))
    ref = reference(x, mask, params)
    assert out.shape == (B, T)
    assert jnp.allclose(out, ref, atol=1e-3, rtol=1e-3), (out, ref)

    # --- multi-block + batch-padding path (forced small row tile) ---
    B2 = 10
    x2 = jax.random.normal(kx2, (B2, T, ENC_HIDDEN), jnp.float32)
    lengths2 = jax.random.randint(kl2, (B2,), 1, T + 1)
    mask2 = jnp.arange(T)[None, :] >= lengths2[:, None]
    out2 = jax.block_until_ready(variance_predictor(x2, mask2, params, rows_target=32))
    ref2 = reference(x2, mask2, params)
    assert out2.shape == (B2, T)
    assert jnp.allclose(out2, ref2, atol=1e-3, rtol=1e-3), (out2, ref2)

    print("KERNEL_OK")
</pallas_src>

<mosaic_0001>
module attributes {stable_mosaic.version = 11 : i64} {
  func.func @_vp_kernel(%arg0: i32, %arg1: memref<2xi32, #tpu.memory_space<smem>>, %arg2: memref<16x32xf32, #tpu.memory_space<vmem>>, %arg3: memref<96x32xf32, #tpu.memory_space<vmem>>, %arg4: memref<1x32xf32, #tpu.memory_space<vmem>>, %arg5: memref<1x32xf32, #tpu.memory_space<vmem>>, %arg6: memref<1x32xf32, #tpu.memory_space<vmem>>, %arg7: memref<96x32xf32, #tpu.memory_space<vmem>>, %arg8: memref<1x32xf32, #tpu.memory_space<vmem>>, %arg9: memref<1x32xf32, #tpu.memory_space<vmem>>, %arg10: memref<1x32xf32, #tpu.memory_space<vmem>>, %arg11: memref<1x32xf32, #tpu.memory_space<vmem>>, %arg12: memref<1x1xf32, #tpu.memory_space<vmem>>, %arg13: memref<2x8xf32, #tpu.memory_space<vmem>>) attributes {dimension_semantics = [#tpu.dimension_semantics<parallel>], iteration_bounds = array<i64: 1>, scalar_prefetch = 1 : i64, scratch_operands = 0 : i64, tpu.core_type = #tpu.core_type<tc>, window_params = [{transform_indices = @transform_0, window_bounds = array<i64: 16, 32>}, {pipeline_mode = #tpu.pipeline_mode<synchronous>, transform_indices = @transform_1, window_bounds = array<i64: 96, 32>}, {pipeline_mode = #tpu.pipeline_mode<synchronous>, transform_indices = @transform_2, window_bounds = array<i64: 1, 32>}, {pipeline_mode = #tpu.pipeline_mode<synchronous>, transform_indices = @transform_3, window_bounds = array<i64: 1, 32>}, {pipeline_mode = #tpu.pipeline_mode<synchronous>, transform_indices = @transform_4, window_bounds = array<i64: 1, 32>}, {pipeline_mode = #tpu.pipeline_mode<synchronous>, transform_indices = @transform_5, window_bounds = array<i64: 96, 32>}, {pipeline_mode = #tpu.pipeline_mode<synchronous>, transform_indices = @transform_6, window_bounds = array<i64: 1, 32>}, {pipeline_mode = #tpu.pipeline_mode<synchronous>, transform_indices = @transform_7, window_bounds = array<i64: 1, 32>}, {pipeline_mode = #tpu.pipeline_mode<synchronous>, transform_indices = @transform_8, window_bounds = array<i64: 1, 32>}, {pipeline_mode = #tpu.pipeline_mode<synchronous>, transform_indices = @transform_9, window_bounds = array<i64: 1, 32>}, {pipeline_mode = #tpu.pipeline_mode<synchronous>, transform_indices = @transform_10, window_bounds = array<i64: 1, 1>}, {transform_indices = @transform_11, window_bounds = array<i64: 2, 8>}]} {
    %c0 = arith.constant 0 : index
    %c0_0 = arith.constant 0 : index
    %0 = vector.load %arg2[%c0, %c0_0] : memref<16x32xf32, #tpu.memory_space<vmem>>, vector<16x32xf32>
    %1 = tpu.iota {dimensions = array<i32: 0>} : vector<16x1xi32>
    %c8_i32 = arith.constant 8 : i32
    %c0_i32 = arith.constant 0 : i32
    %2 = arith.cmpi eq, %c8_i32, %c0_i32 : i32
    %c1_i32 = arith.constant 1 : i32
    %3 = arith.select %2, %c1_i32, %c8_i32 : i32
    %4 = vector.broadcast %3 : i32 to vector<16x1xi32>
    %5 = arith.remsi %1, %4 : vector<16x1xi32>
    %c0_i32_1 = arith.constant 0 : i32
    %6 = vector.broadcast %c0_i32_1 : i32 to vector<16x1xi32>
    %7 = arith.cmpi ne, %5, %6 : vector<16x1xi32>
    %c0_i32_2 = arith.constant 0 : i32
    %8 = vector.broadcast %c0_i32_2 : i32 to vector<16x1xi32>
    %9 = arith.cmpi slt, %5, %8 : vector<16x1xi32>
    %c0_i32_3 = arith.constant 0 : i32
    %10 = arith.cmpi slt, %3, %c0_i32_3 : i32
    %11 = vector.broadcast %10 : i1 to vector<16x1xi1>
    %12 = vector.broadcast %11 : vector<16x1xi1> to vector<16x1xi1>
    %13 = arith.xori %9, %12 : vector<16x1xi1>
    %14 = arith.andi %13, %7 : vector<16x1xi1>
    %15 = vector.broadcast %3 : i32 to vector<16x1xi32>
    %16 = arith.addi %5, %15 : vector<16x1xi32>
    %17 = arith.select %14, %16, %5 : vector<16x1xi1>, vector<16x1xi32>
    %c0_4 = arith.constant 0 : index
    %c0_5 = arith.constant 0 : index
    %18 = vector.load %arg4[%c0_4, %c0_5] : memref<1x32xf32, #tpu.memory_space<vmem>>, vector<1x32xf32>
    %c1_i32_6 = arith.constant 1 : i32
    %19 = tpu.dynamic_rotate %0 by %c1_i32_6 dim 0 : vector<16x32xf32>, i32 -> vector<16x32xf32>
    %c-1_i32 = arith.constant -1 : i32
    %20 = vector.broadcast %c-1_i32 : i32 to vector<16x1xi32>
    %21 = arith.addi %17, %20 : vector<16x1xi32>
    %c0_i32_7 = arith.constant 0 : i32
    %22 = vector.broadcast %c0_i32_7 : i32 to vector<16x1xi32>
    %23 = arith.cmpi sge, %21, %22 : vector<16x1xi32>
    %c-1_i32_8 = arith.constant -1 : i32
    %24 = vector.broadcast %c-1_i32_8 : i32 to vector<16x1xi32>
    %25 = arith.addi %17, %24 : vector<16x1xi32>
    %c8_i32_9 = arith.constant 8 : i32
    %26 = vector.broadcast %c8_i32_9 : i32 to vector<16x1xi32>
    %27 = arith.cmpi slt, %25, %26 : vector<16x1xi32>
    %28 = arith.andi %23, %27 : vector<16x1xi1>
    %cst = arith.constant 0.000000e+00 : f32
    %29 = vector.shape_cast %28 : vector<16x1xi1> to vector<16x1xi1>
    %30 = vector.broadcast %29 : vector<16x1xi1> to vector<16x32xi1>
    %31 = vector.broadcast %cst : f32 to vector<16x32xf32>
    %32 = arith.select %30, %19, %31 : vector<16x32xi1>, vector<16x32xf32>
    %c15_i32 = arith.constant 15 : i32
    %33 = tpu.dynamic_rotate %0 by %c15_i32 dim 0 : vector<16x32xf32>, i32 -> vector<16x32xf32>
    %c1_i32_10 = arith.constant 1 : i32
    %34 = vector.broadcast %c1_i32_10 : i32 to vector<16x1xi32>
    %35 = arith.addi %17, %34 : vector<16x1xi32>
    %c0_i32_11 = arith.constant 0 : i32
    %36 = vector.broadcast %c0_i32_11 : i32 to vector<16x1xi32>
    %37 = arith.cmpi sge, %35, %36 : vector<16x1xi32>
    %c1_i32_12 = arith.constant 1 : i32
    %38 = vector.broadcast %c1_i32_12 : i32 to vector<16x1xi32>
    %39 = arith.addi %17, %38 : vector<16x1xi32>
    %c8_i32_13 = arith.constant 8 : i32
    %40 = vector.broadcast %c8_i32_13 : i32 to vector<16x1xi32>
    %41 = arith.cmpi slt, %39, %40 : vector<16x1xi32>
    %42 = arith.andi %37, %41 : vector<16x1xi1>
    %cst_14 = arith.constant 0.000000e+00 : f32
    %43 = vector.shape_cast %42 : vector<16x1xi1> to vector<16x1xi1>
    %44 = vector.broadcast %43 : vector<16x1xi1> to vector<16x32xi1>
    %45 = vector.broadcast %cst_14 : f32 to vector<16x32xf32>
    %46 = arith.select %44, %33, %45 : vector<16x32xi1>, vector<16x32xf32>
    %47 = tpu.concatenate %32, %0, %46 in 1 : vector<16x32xf32>, vector<16x32xf32>, vector<16x32xf32> -> vector<16x96xf32>
    %c0_15 = arith.constant 0 : index
    %c0_16 = arith.constant 0 : index
    %48 = vector.load %arg3[%c0_15, %c0_16] : memref<96x32xf32, #tpu.memory_space<vmem>>, vector<96x32xf32>
    %cst_17 = arith.constant dense<0.000000e+00> : vector<16x32xf32>
    %49 = tpu.matmul %47, %48, %cst_17 {dimension_numbers = #tpu.dot_dimension_numbers<[1], [0], [0], [1], [0, 0, 1, 1], [], []>} : vector<16x96xf32>, vector<96x32xf32>, vector<16x32xf32> -> vector<16x32xf32>
    %50 = vector.broadcast %18 : vector<1x32xf32> to vector<16x32xf32>
    %51 = arith.addf %49, %50 : vector<16x32xf32>
    %cst_18 = arith.constant 0.000000e+00 : f32
    %52 = vector.broadcast %cst_18 : f32 to vector<16x32xf32>
    %53 = arith.maximumf %51, %52 : vector<16x32xf32>
    %c0_19 = arith.constant 0 : index
    %c0_20 = arith.constant 0 : index
    %54 = vector.load %arg5[%c0_19, %c0_20] : memref<1x32xf32, #tpu.memory_space<vmem>>, vector<1x32xf32>
    %c0_21 = arith.constant 0 : index
    %c0_22 = arith.constant 0 : index
    %55 = vector.load %arg6[%c0_21, %c0_22] : memref<1x32xf32, #tpu.memory_space<vmem>>, vector<1x32xf32>
    %cst_23 = arith.constant dense<0.000000e+00> : vector<16xf32>
    %56 = vector.multi_reduction <add>, %53, %cst_23 [1] : vector<16x32xf32> to vector<16xf32>
    %57 = vector.shape_cast %56 : vector<16xf32> to vector<16x1xf32>
    %cst_24 = arith.constant 3.200000e+01 : f32
    %58 = vector.broadcast %cst_24 : f32 to vector<16x1xf32>
    %59 = arith.divf %57, %58 : vector<16x1xf32>
    %60 = vector.broadcast %59 : vector<16x1xf32> to vector<16x32xf32>
    %61 = arith.subf %53, %60 : vector<16x32xf32>
    %62 = arith.mulf %61, %61 : vector<16x32xf32>
    %cst_25 = arith.constant dense<0.000000e+00> : vector<16xf32>
    %63 = vector.multi_reduction <add>, %62, %cst_25 [1] : vector<16x32xf32> to vector<16xf32>
    %64 = vector.shape_cast %63 : vector<16xf32> to vector<16x1xf32>
    %cst_26 = arith.constant 3.200000e+01 : f32
    %65 = vector.broadcast %cst_26 : f32 to vector<16x1xf32>
    %66 = arith.divf %64, %65 : vector<16x1xf32>
    %67 = vector.broadcast %59 : vector<16x1xf32> to vector<16x32xf32>
    %68 = arith.subf %53, %67 : vector<16x32xf32>
    %cst_27 = arith.constant 9.99999974E-6 : f32
    %69 = vector.broadcast %cst_27 : f32 to vector<16x1xf32>
    %70 = arith.addf %66, %69 : vector<16x1xf32>
    %71 = math.rsqrt %70 : vector<16x1xf32>
    %72 = vector.broadcast %71 : vector<16x1xf32> to vector<16x32xf32>
    %73 = arith.mulf %68, %72 : vector<16x32xf32>
    %74 = vector.broadcast %54 : vector<1x32xf32> to vector<16x32xf32>
    %75 = arith.mulf %73, %74 : vector<16x32xf32>
    %76 = vector.broadcast %55 : vector<1x32xf32> to vector<16x32xf32>
    %77 = arith.addf %75, %76 : vector<16x32xf32>
    %c0_28 = arith.constant 0 : index
    %c0_29 = arith.constant 0 : index
    %78 = vector.load %arg8[%c0_28, %c0_29] : memref<1x32xf32, #tpu.memory_space<vmem>>, vector<1x32xf32>
    %c1_i32_30 = arith.constant 1 : i32
    %79 = tpu.dynamic_rotate %77 by %c1_i32_30 dim 0 : vector<16x32xf32>, i32 -> vector<16x32xf32>
    %c-1_i32_31 = arith.constant -1 : i32
    %80 = vector.broadcast %c-1_i32_31 : i32 to vector<16x1xi32>
    %81 = arith.addi %17, %80 : vector<16x1xi32>
    %c0_i32_32 = arith.constant 0 : i32
    %82 = vector.broadcast %c0_i32_32 : i32 to vector<16x1xi32>
    %83 = arith.cmpi sge, %81, %82 : vector<16x1xi32>
    %c-1_i32_33 = arith.constant -1 : i32
    %84 = vector.broadcast %c-1_i32_33 : i32 to vector<16x1xi32>
    %85 = arith.addi %17, %84 : vector<16x1xi32>
    %c8_i32_34 = arith.constant 8 : i32
    %86 = vector.broadcast %c8_i32_34 : i32 to vector<16x1xi32>
    %87 = arith.cmpi slt, %85, %86 : vector<16x1xi32>
    %88 = arith.andi %83, %87 : vector<16x1xi1>
    %cst_35 = arith.constant 0.000000e+00 : f32
    %89 = vector.shape_cast %88 : vector<16x1xi1> to vector<16x1xi1>
    %90 = vector.broadcast %89 : vector<16x1xi1> to vector<16x32xi1>
    %91 = vector.broadcast %cst_35 : f32 to vector<16x32xf32>
    %92 = arith.select %90, %79, %91 : vector<16x32xi1>, vector<16x32xf32>
    %c15_i32_36 = arith.constant 15 : i32
    %93 = tpu.dynamic_rotate %77 by %c15_i32_36 dim 0 : vector<16x32xf32>, i32 -> vector<16x32xf32>
    %c1_i32_37 = arith.constant 1 : i32
    %94 = vector.broadcast %c1_i32_37 : i32 to vector<16x1xi32>
    %95 = arith.addi %17, %94 : vector<16x1xi32>
    %c0_i32_38 = arith.constant 0 : i32
    %96 = vector.broadcast %c0_i32_38 : i32 to vector<16x1xi32>
    %97 = arith.cmpi sge, %95, %96 : vector<16x1xi32>
    %c1_i32_39 = arith.constant 1 : i32
    %98 = vector.broadcast %c1_i32_39 : i32 to vector<16x1xi32>
    %99 = arith.addi %17, %98 : vector<16x1xi32>
    %c8_i32_40 = arith.constant 8 : i32
    %100 = vector.broadcast %c8_i32_40 : i32 to vector<16x1xi32>
    %101 = arith.cmpi slt, %99, %100 : vector<16x1xi32>
    %102 = arith.andi %97, %101 : vector<16x1xi1>
    %cst_41 = arith.constant 0.000000e+00 : f32
    %103 = vector.shape_cast %102 : vector<16x1xi1> to vector<16x1xi1>
    %104 = vector.broadcast %103 : vector<16x1xi1> to vector<16x32xi1>
    %105 = vector.broadcast %cst_41 : f32 to vector<16x32xf32>
    %106 = arith.select %104, %93, %105 : vector<16x32xi1>, vector<16x32xf32>
    %107 = tpu.concatenate %92, %77, %106 in 1 : vector<16x32xf32>, vector<16x32xf32>, vector<16x32xf32> -> vector<16x96xf32>
    %c0_42 = arith.constant 0 : index
    %c0_43 = arith.constant 0 : index
    %108 = vector.load %arg7[%c0_42, %c0_43] : memref<96x32xf32, #tpu.memory_space<vmem>>, vector<96x32xf32>
    %cst_44 = arith.constant dense<0.000000e+00> : vector<16x32xf32>
    %109 = tpu.matmul %107, %108, %cst_44 {dimension_numbers = #tpu.dot_dimension_numbers<[1], [0], [0], [1], [0, 0, 1, 1], [], []>} : vector<16x96xf32>, vector<96x32xf32>, vector<16x32xf32> -> vector<16x32xf32>
    %110 = vector.broadcast %78 : vector<1x32xf32> to vector<16x32xf32>
    %111 = arith.addf %109, %110 : vector<16x32xf32>
    %cst_45 = arith.constant 0.000000e+00 : f32
    %112 = vector.broadcast %cst_45 : f32 to vector<16x32xf32>
    %113 = arith.maximumf %111, %112 : vector<16x32xf32>
    %c0_46 = arith.constant 0 : index
    %c0_47 = arith.constant 0 : index
    %114 = vector.load %arg9[%c0_46, %c0_47] : memref<1x32xf32, #tpu.memory_space<vmem>>, vector<1x32xf32>
    %c0_48 = arith.constant 0 : index
    %c0_49 = arith.constant 0 : index
    %115 = vector.load %arg10[%c0_48, %c0_49] : memref<1x32xf32, #tpu.memory_space<vmem>>, vector<1x32xf32>
    %cst_50 = arith.constant dense<0.000000e+00> : vector<16xf32>
    %116 = vector.multi_reduction <add>, %113, %cst_50 [1] : vector<16x32xf32> to vector<16xf32>
    %117 = vector.shape_cast %116 : vector<16xf32> to vector<16x1xf32>
    %cst_51 = arith.constant 3.200000e+01 : f32
    %118 = vector.broadcast %cst_51 : f32 to vector<16x1xf32>
    %119 = arith.divf %117, %118 : vector<16x1xf32>
    %120 = vector.broadcast %119 : vector<16x1xf32> to vector<16x32xf32>
    %121 = arith.subf %113, %120 : vector<16x32xf32>
    %122 = arith.mulf %121, %121 : vector<16x32xf32>
    %cst_52 = arith.constant dense<0.000000e+00> : vector<16xf32>
    %123 = vector.multi_reduction <add>, %122, %cst_52 [1] : vector<16x32xf32> to vector<16xf32>
    %124 = vector.shape_cast %123 : vector<16xf32> to vector<16x1xf32>
    %cst_53 = arith.constant 3.200000e+01 : f32
    %125 = vector.broadcast %cst_53 : f32 to vector<16x1xf32>
    %126 = arith.divf %124, %125 : vector<16x1xf32>
    %127 = vector.broadcast %119 : vector<16x1xf32> to vector<16x32xf32>
    %128 = arith.subf %113, %127 : vector<16x32xf32>
    %cst_54 = arith.constant 9.99999974E-6 : f32
    %129 = vector.broadcast %cst_54 : f32 to vector<16x1xf32>
    %130 = arith.addf %126, %129 : vector<16x1xf32>
    %131 = math.rsqrt %130 : vector<16x1xf32>
    %132 = vector.broadcast %131 : vector<16x1xf32> to vector<16x32xf32>
    %133 = arith.mulf %128, %132 : vector<16x32xf32>
    %134 = vector.broadcast %114 : vector<1x32xf32> to vector<16x32xf32>
    %135 = arith.mulf %133, %134 : vector<16x32xf32>
    %136 = vector.broadcast %115 : vector<1x32xf32> to vector<16x32xf32>
    %137 = arith.addf %135, %136 : vector<16x32xf32>
    %138 = vector.shape_cast %137 : vector<16x32xf32> to vector<2x8x32xf32>
    %c0_55 = arith.constant 0 : index
    %c0_56 = arith.constant 0 : index
    %139 = vector.load %arg11[%c0_55, %c0_56] : memref<1x32xf32, #tpu.memory_space<vmem>>, vector<1x32xf32>
    %140 = vector.shape_cast %139 : vector<1x32xf32> to vector<1x1x32xf32>
    %141 = vector.broadcast %140 : vector<1x1x32xf32> to vector<2x8x32xf32>
    %142 = arith.mulf %138, %141 : vector<2x8x32xf32>
    %cst_57 = arith.constant dense<0.000000e+00> : vector<2x8xf32>
    %143 = vector.multi_reduction <add>, %142, %cst_57 [2] : vector<2x8x32xf32> to vector<2x8xf32>
    %c0_58 = arith.constant 0 : index
    %c0_59 = arith.constant 0 : index
    %144 = vector.load %arg12[%c0_58, %c0_59] : memref<1x1xf32, #tpu.memory_space<vmem>>, vector<1x1xf32>
    %145 = vector.broadcast %144 : vector<1x1xf32> to vector<2x8xf32>
    %146 = arith.addf %143, %145 : vector<2x8xf32>
    %147 = tpu.iota {dimensions = array<i32: 1>} : vector<2x8xi32>
    %148 = tpu.iota {dimensions = array<i32: 0>} : vector<2x8xi32>
    %c0_i32_60 = arith.constant 0 : i32
    %149 = vector.broadcast %c0_i32_60 : i32 to vector<2x8xi32>
    %c0_i32_61 = arith.constant 0 : i32
    %150 = vector.broadcast %c0_i32_61 : i32 to vector<2x8xi32>
    %151 = arith.cmpi eq, %148, %150 : vector<2x8xi32>
    %c2_i32 = arith.constant 2 : i32
    %152 = arith.muli %arg0, %c2_i32 : i32
    %c0_i32_62 = arith.constant 0 : i32
    %153 = arith.addi %152, %c0_i32_62 : i32
    %154 = arith.index_cast %153 : i32 to index
    %155 = memref.load %arg1[%154] : memref<2xi32, #tpu.memory_space<smem>>
    %156 = vector.broadcast %155 : i32 to vector<2x8xi32>
    %157 = arith.select %151, %156, %149 : vector<2x8xi1>, vector<2x8xi32>
    %c1_i32_63 = arith.constant 1 : i32
    %158 = vector.broadcast %c1_i32_63 : i32 to vector<2x8xi32>
    %159 = arith.cmpi eq, %148, %158 : vector<2x8xi32>
    %c2_i32_64 = arith.constant 2 : i32
    %160 = arith.muli %arg0, %c2_i32_64 : i32
    %c1_i32_65 = arith.constant 1 : i32
    %161 = arith.addi %160, %c1_i32_65 : i32
    %162 = arith.index_cast %161 : i32 to index
    %163 = memref.load %arg1[%162] : memref<2xi32, #tpu.memory_space<smem>>
    %164 = vector.broadcast %163 : i32 to vector<2x8xi32>
    %165 = arith.select %159, %164, %157 : vector<2x8xi1>, vector<2x8xi32>
    %166 = arith.cmpi sge, %147, %165 : vector<2x8xi32>
    %cst_66 = arith.constant 0.000000e+00 : f32
    %167 = vector.broadcast %cst_66 : f32 to vector<2x8xf32>
    %168 = arith.select %166, %167, %146 : vector<2x8xi1>, vector<2x8xf32>
    %c0_67 = arith.constant 0 : index
    %c0_68 = arith.constant 0 : index
    %169 = vector.load %arg13[%c0_67, %c0_68] : memref<2x8xf32, #tpu.memory_space<vmem>>, vector<2x8xf32>
    tpu.vector_store %arg13[%c0_67, %c0_68], %168 {strides = array<i32>} : memref<2x8xf32, #tpu.memory_space<vmem>>, vector<2x8xf32>,
    return
  }
  func.func @transform_0(%arg0: i32, %arg1: memref<2xi32, #tpu.memory_space<smem>>) -> (i32, i32) {
    %c0_i32 = arith.constant 0 : i32
    %c0_i32_0 = arith.constant 0 : i32
    return %arg0, %c0_i32 : i32, i32
  }
  func.func @transform_1(%arg0: i32, %arg1: memref<2xi32, #tpu.memory_space<smem>>) -> (i32, i32) {
    %c0_i32 = arith.constant 0 : i32
    %c0_i32_0 = arith.constant 0 : i32
    %c0_i32_1 = arith.constant 0 : i32
    return %c0_i32, %c0_i32_0 : i32, i32
  }
  func.func @transform_2(%arg0: i32, %arg1: memref<2xi32, #tpu.memory_space<smem>>) -> (i32, i32) {
    %c0_i32 = arith.constant 0 : i32
    %c0_i32_0 = arith.constant 0 : i32
    %c0_i32_1 = arith.constant 0 : i32
    return %c0_i32, %c0_i32_0 : i32, i32
  }
  func.func @transform_3(%arg0: i32, %arg1: memref<2xi32, #tpu.memory_space<smem>>) -> (i32, i32) {
    %c0_i32 = arith.constant 0 : i32
    %c0_i32_0 = arith.constant 0 : i32
    %c0_i32_1 = arith.constant 0 : i32
    return %c0_i32, %c0_i32_0 : i32, i32
  }
  func.func @transform_4(%arg0: i32, %arg1: memref<2xi32, #tpu.memory_space<smem>>) -> (i32, i32) {
    %c0_i32 = arith.constant 0 : i32
    %c0_i32_0 = arith.constant 0 : i32
    %c0_i32_1 = arith.constant 0 : i32
    return %c0_i32, %c0_i32_0 : i32, i32
  }
  func.func @transform_5(%arg0: i32, %arg1: memref<2xi32, #tpu.memory_space<smem>>) -> (i32, i32) {
    %c0_i32 = arith.constant 0 : i32
    %c0_i32_0 = arith.constant 0 : i32
    %c0_i32_1 = arith.constant 0 : i32
    return %c0_i32, %c0_i32_0 : i32, i32
  }
  func.func @transform_6(%arg0: i32, %arg1: memref<2xi32, #tpu.memory_space<smem>>) -> (i32, i32) {
    %c0_i32 = arith.constant 0 : i32
    %c0_i32_0 = arith.constant 0 : i32
    %c0_i32_1 = arith.constant 0 : i32
    return %c0_i32, %c0_i32_0 : i32, i32
  }
  func.func @transform_7(%arg0: i32, %arg1: memref<2xi32, #tpu.memory_space<smem>>) -> (i32, i32) {
    %c0_i32 = arith.constant 0 : i32
    %c0_i32_0 = arith.constant 0 : i32
    %c0_i32_1 = arith.constant 0 : i32
    return %c0_i32, %c0_i32_0 : i32, i32
  }
  func.func @transform_8(%arg0: i32, %arg1: memref<2xi32, #tpu.memory_space<smem>>) -> (i32, i32) {
    %c0_i32 = arith.constant 0 : i32
    %c0_i32_0 = arith.constant 0 : i32
    %c0_i32_1 = arith.constant 0 : i32
    return %c0_i32, %c0_i32_0 : i32, i32
  }
  func.func @transform_9(%arg0: i32, %arg1: memref<2xi32, #tpu.memory_space<smem>>) -> (i32, i32) {
    %c0_i32 = arith.constant 0 : i32
    %c0_i32_0 = arith.constant 0 : i32
    %c0_i32_1 = arith.constant 0 : i32
    return %c0_i32, %c0_i32_0 : i32, i32
  }
  func.func @transform_10(%arg0: i32, %arg1: memref<2xi32, #tpu.memory_space<smem>>) -> (i32, i32) {
    %c0_i32 = arith.constant 0 : i32
    %c0_i32_0 = arith.constant 0 : i32
    %c0_i32_1 = arith.constant 0 : i32
    return %c0_i32, %c0_i32_0 : i32, i32
  }
  func.func @transform_11(%arg0: i32, %arg1: memref<2xi32, #tpu.memory_space<smem>>) -> (i32, i32) {
    %c0_i32 = arith.constant 0 : i32
    %c0_i32_0 = arith.constant 0 : i32
    return %arg0, %c0_i32 : i32, i32
  }
}

</mosaic_0001>

<llo_original>
// kernel: tpu_custom_call.1
$region0: #{tpu_custom_call.1}
  #allocation0 [shape = 'u32[]', space=smem, size = 0x4, offset = 0x4, fixed_abs, tag = 'smem constant byte address 0x4 - core index']
  #allocation1 [shape = 'u32[144,128]{1,0:T(1,128)}', space=vmem, size = 0x12000, scoped, tag = 'internal scratch']
  #allocation2 [shape = 's32[1]{0}', space=sflag, size = 0x4, scoped, tag = 'scoped memory for tpu_custom_call.1']
  #allocation3 [shape = 'u8[512]{0}', space=smem, size = 0x200, scoped, tag = 'prefetched SMEM operand 0']
  #allocation4 [shape = 'f32[1,1]{1,0:T(1,128)S(1)}', space=vmem, size = 0x200, scoped, tag = 'scoped memory for tpu_custom_call.1']
  %s0 = inlined_call_operand.vmem [shape: s32[2], index: 0, kind: input, shape index: {}]
  %s1 = inlined_call_operand.vmem [shape: f32[16,32], index: 1, kind: input, shape index: {}]
  %s2 = inlined_call_operand.vmem [shape: f32[96,32], index: 2, kind: input, shape index: {}]
  %s3 = inlined_call_operand.vmem [shape: f32[1,32], index: 3, kind: input, shape index: {}]
  %s4 = inlined_call_operand.vmem [shape: f32[1,32], index: 4, kind: input, shape index: {}]
  %s5 = inlined_call_operand.vmem [shape: f32[1,32], index: 5, kind: input, shape index: {}]
  %s6 = inlined_call_operand.vmem [shape: f32[96,32], index: 6, kind: input, shape index: {}]
  %s7 = inlined_call_operand.vmem [shape: f32[1,32], index: 7, kind: input, shape index: {}]
  %s8 = inlined_call_operand.vmem [shape: f32[1,32], index: 8, kind: input, shape index: {}]
  %s9 = inlined_call_operand.vmem [shape: f32[1,32], index: 9, kind: input, shape index: {}]
  %s10 = inlined_call_operand.vmem [shape: f32[1,32], index: 10, kind: input, shape index: {}]
  %s11 = inlined_call_operand.<no memory space> [shape: f32[1,1], index: 11, kind: input, shape index: {}]
  %s12 = inlined_call_operand.hbm [shape: f32[2,8], index: 12, kind: output, shape index: {}]
  %s13 = sld [smem:[#allocation0]]
  $region54: #{tpu_custom_call.1} parent=0
    _
  %s15 = ssub.s32 1, %s13
  %s16 = scalar_select 0, %s15, %s13
  %s17 = sshll.u32 %s0, 4
  %s18 = int_to_ptr.vmem [resolvable:$true] %s17
  %20 = dma.vmem_to_smem %s18, 16, [#allocation3], [#allocation2]
  %v21 = vstv %s11
  %22 = vst [vmem:[#allocation4] sm:$0x1] %v21
  %23 = dma.done [#allocation2], 16
  %24 = sfence
  $region1: #{tpu_custom_call.1} parent=0
    #allocation5 [shape = 'u8[1024]{0}', space=vmem, size = 0x400, scoped, tag = 'output window, operand 0, single buffered']
    #allocation6 [shape = 's32[1]{0}', space=sflag, size = 0x4, scoped, tag = 'scoped memory for tpu_custom_call.1']
    %25 = vsyncpa [#allocation6], 0
    // Predicated region
    $region2: #{tpu_custom_call.1} parent=1 // pred_check
      _
    $region3: #{tpu_custom_call.1} parent=1 // pred_check_branch
      %27 = sbr.rel (0) target = $region5
    $region4: #{tpu_custom_call.1} parent=1 // pred_region
      _
    $region5: #{tpu_custom_call.1} parent=1 // pred_fallthru
      _
    // Predicated region
    $region6: #{tpu_custom_call.1} parent=1 // pred_check
      _
    $region7: #{tpu_custom_call.1} parent=1 // pred_check_branch
      %29 = sbr.rel (0) target = $region9
    $region8: #{tpu_custom_call.1} parent=1 // pred_region
      _
    $region9: #{tpu_custom_call.1} parent=1 // pred_fallthru
      _
    // Predicated region
    $region10: #{tpu_custom_call.1} parent=1 // pred_check
      _
    $region11: #{tpu_custom_call.1} parent=1 // pred_check_branch
      %31 = sbr.rel (0) target = $region13
    $region12: #{tpu_custom_call.1} parent=1 // pred_region
      _
    $region13: #{tpu_custom_call.1} parent=1 // pred_fallthru
      _
    // Predicated region
    $region14: #{tpu_custom_call.1} parent=1 // pred_check
      _
    $region15: #{tpu_custom_call.1} parent=1 // pred_check_branch
      %33 = sbr.rel (0) target = $region17
    $region16: #{tpu_custom_call.1} parent=1 // pred_region
      _
    $region17: #{tpu_custom_call.1} parent=1 // pred_fallthru
      _
    // Predicated region
    $region18: #{tpu_custom_call.1} parent=1 // pred_check
      _
    $region19: #{tpu_custom_call.1} parent=1 // pred_check_branch
      %35 = sbr.rel (0) target = $region21
    $region20: #{tpu_custom_call.1} parent=1 // pred_region
      _
    $region21: #{tpu_custom_call.1} parent=1 // pred_fallthru
      _
    // Predicated region
    $region22: #{tpu_custom_call.1} parent=1 // pred_check
      _
    $region23: #{tpu_custom_call.1} parent=1 // pred_check_branch
      %37 = sbr.rel (0) target = $region25
    $region24: #{tpu_custom_call.1} parent=1 // pred_region
      _
    $region25: #{tpu_custom_call.1} parent=1 // pred_fallthru
      _
    // Predicated region
    $region26: #{tpu_custom_call.1} parent=1 // pred_check
      _
    $region27: #{tpu_custom_call.1} parent=1 // pred_check_branch
      %39 = sbr.rel (0) target = $region29
    $region28: #{tpu_custom_call.1} parent=1 // pred_region
      _
    $region29: #{tpu_custom_call.1} parent=1 // pred_fallthru
      _
    // Predicated region
    $region30: #{tpu_custom_call.1} parent=1 // pred_check
      _
    $region31: #{tpu_custom_call.1} parent=1 // pred_check_branch
      %41 = sbr.rel (0) target = $region33
    $region32: #{tpu_custom_call.1} parent=1 // pred_region
      _
    $region33: #{tpu_custom_call.1} parent=1 // pred_fallthru
      _
    // Predicated region
    $region34: #{tpu_custom_call.1} parent=1 // pred_check
      _
    $region35: #{tpu_custom_call.1} parent=1 // pred_check_branch
      %43 = sbr.rel (0) target = $region37
    $region36: #{tpu_custom_call.1} parent=1 // pred_region
      _
    $region37: #{tpu_custom_call.1} parent=1 // pred_fallthru
      _
    // Predicated region
    $region38: #{tpu_custom_call.1} parent=1 // pred_check
      _
    $region39: #{tpu_custom_call.1} parent=1 // pred_check_branch
      %45 = sbr.rel (0) target = $region41
    $region40: #{tpu_custom_call.1} parent=1 // pred_region
      _
    $region41: #{tpu_custom_call.1} parent=1 // pred_fallthru
      _
    // Predicated region
    $region42: #{tpu_custom_call.1} parent=1 // pred_check
      _
    $region43: #{tpu_custom_call.1} parent=1 // pred_check_branch
      %47 = sbr.rel (0) target = $region45
    $region44: #{tpu_custom_call.1} parent=1 // pred_region
      _
    $region45: #{tpu_custom_call.1} parent=1 // pred_fallthru
      _
    %v48 = vld [vmem:[%s1] sm:$0xff]
    %v49 = vld [vmem:[%s1 + $0x8] sm:$0xff]
    %v50 = vlaneseq
    %v51 = vshrl.u32 %v50, 7
    %v52 = vadd.s32 %v51, 8
    %vm53 = vcmp.lt.s32.totalorder %v51, 0
    %v54 = vsub.s32 0, %v51
    %v55 = vsel %vm53, %v54, %v51
    %v56 = vshrl.u32 %v55, 3
    %v57 = vand.u32 %v55, 7
    %v58 = vsub.s32 0, %v57
    %v59 = vsel %vm53, %v58, %v57
    %vm60 = vcmp.lt.s32.totalorder %v52, 0
    %v61 = vsub.s32 0, %v52
    %v62 = vsel %vm60, %v61, %v52
    %v63 = vshrl.u32 %v62, 3
    %v64 = vand.u32 %v62, 7
    %v65 = vsub.s32 0, %v64
    %v66 = vsel %vm60, %v65, %v64
    %vm67 = vcmp.ne.s32.totalorder %v59, 0
    %vm68 = vcmp.ne.s32.totalorder %v66, 0
    %vm69 = vcmp.lt.s32.totalorder %v59, 0
    %vm70 = vcmp.lt.s32.totalorder %v66, 0
    %vm71 = vmand %vm69, %vm67
    %vm72 = vmand %vm70, %vm68
    %v73 = vadd.s32 %v59, 8
    %v74 = vadd.s32 %v66, 8
    %v75 = vsel %vm71, %v73, %v59
    %v76 = vsel %vm72, %v74, %v66
    %v77 = vld [vmem:[%s3] sm:$0x1]
    %v78 = vrot.slane %v48, 7
    %v79 = vrot.slane %v49, 7
    %vm80 = vcmp.lt.s32.totalorder %v51, 1
    %v81 = vsel %vm80, %v78, %v79
    %v82 = vsel %vm80, %v79, %v78
    %v83 = vadd.s32 %v75, 4294967295
    %v84 = vadd.s32 %v76, 4294967295
    %vm85 = vcmp.ge.s32.totalorder %v83, 0
    %vm86 = vcmp.ge.s32.totalorder %v84, 0
    %vm87 = vcmp.lt.s32.totalorder %v83, 8
    %vm88 = vcmp.lt.s32.totalorder %v84, 8
    %vm89 = vmand %vm85, %vm87
    %vm90 = vmand %vm86, %vm88
    %v91 = vsel %vm89, 1, 0
    %v92 = vsel %vm90, 1, 0
    %vm93 = vcmp.eq.s32.totalorder %v91, 1
    %vm94 = vcmp.eq.s32.totalorder %v92, 1
    %v95 = vsel %vm93, %v82, 0.0
    %v96 = vsel %vm94, %v81, 0.0
    %v97 = vrot.slane %v48, 1
    %v98 = vrot.slane %v49, 1
    %vm99 = vcmp.lt.s32.totalorder %v51, 7
    %v100 = vsel %vm99, %v97, %v98
    %v101 = vsel %vm99, %v98, %v97
    %v102 = vadd.s32 %v75, 1
    %v103 = vadd.s32 %v76, 1
    %vm104 = vcmp.ge.s32.totalorder %v102, 0
    %vm105 = vcmp.ge.s32.totalorder %v103, 0
    %vm106 = vcmp.lt.s32.totalorder %v102, 8
    %vm107 = vcmp.lt.s32.totalorder %v103, 8
    %vm108 = vmand %vm104, %vm106
    %vm109 = vmand %vm105, %vm107
    %v110 = vsel %vm108, 1, 0
    %v111 = vsel %vm109, 1, 0
    %vm112 = vcmp.eq.s32.totalorder %v110, 1
    %vm113 = vcmp.eq.s32.totalorder %v111, 1
    %v114 = vsel %vm112, %v100, 0.0
    %v115 = vsel %vm113, %v101, 0.0
    %118 = vrot.lane.b32.xlu0 %v48, 32
    %v119 = vpop.permute.xlu0 %118
    %120 = vrot.lane.b32.xlu0 %v49, 32
    %v121 = vpop.permute.xlu0 %120
    %126 = vrot.lane.b32.xlu0 %v114, 64
    %v127 = vpop.permute.xlu0 %126
    %128 = vrot.lane.b32.xlu0 %v115, 64
    %v129 = vpop.permute.xlu0 %128
    %vm132 = vcmask 261120
    %v133 = vsel %vm132, %v95, %v119
    %v134 = vsel %vm132, %v96, %v121
    %vm135 = vcmask 523264
    %v136 = vsel %vm135, %v133, %v127
    %v137 = vsel %vm135, %v134, %v129
    %v138 = vld [vmem:[%s2] sm:$0xff]
    %v139 = vld [vmem:[%s2 + $0x8] sm:$0xff]
    %v140 = vld [vmem:[%s2 + $0x10] sm:$0xff]
    %v141 = vld [vmem:[%s2 + $0x18] sm:$0xff]
    %v142 = vld [vmem:[%s2 + $0x20] sm:$0xff]
    %v143 = vld [vmem:[%s2 + $0x28] sm:$0xff]
    %v144 = vld [vmem:[%s2 + $0x30] sm:$0xff]
    %v145 = vld [vmem:[%s2 + $0x38] sm:$0xff]
    %v146 = vld [vmem:[%s2 + $0x40] sm:$0xff]
    %v147 = vld [vmem:[%s2 + $0x48] sm:$0xff]
    %v148 = vld [vmem:[%s2 + $0x50] sm:$0xff]
    %v149 = vld [vmem:[%s2 + $0x58] sm:$0xff]
    %v151 = vlaneseq
    %v152 = vshrl.u32 %v151, 7
    %v153 = vsub.s32 0, %v152
    %v154 = vrot.slane %v77, %v153
    %vm156 = vcmask 785408
    %v158 = vsel %vm156, %v136, 0
    %v161 = vsel %vm156, %v137, 0
    %163 = vmatprep.subr.mxu0 0.0
    %164 = vmatpush1.msra.mxu0 0.0
    %165 = vmatprep.subr.mxu0 0.0
    %166 = vmatpush1.msra.mxu0 0.0
    %167 = vmatprep.subr.mxu0 0.0
    %168 = vmatpush1.msra.mxu0 0.0
    %169 = vmatprep.subr.mxu0 0.0
    %170 = vmatpush1.msra.mxu0 0.0
    %171 = vmatprep.subr.mxu0 0.0
    %172 = vmatpush1.msra.mxu0 %v149
    %173 = vmatprep.subr.mxu0 0.0
    %174 = vmatpush1.msra.mxu0 %v148
    %175 = vmatprep.subr.mxu0 0.0
    %176 = vmatpush1.msra.mxu0 %v147
    %177 = vmatprep.subr.mxu0 0.0
    %178 = vmatpush1.msra.mxu0 %v146
    %179 = vmatprep.subr.mxu0 0.0
    %180 = vmatpush1.msra.mxu0 %v145
    %181 = vmatprep.subr.mxu0 0.0
    %182 = vmatpush1.msra.mxu0 %v144
    %183 = vmatprep.subr.mxu0 0.0
    %184 = vmatpush1.msra.mxu0 %v143
    %185 = vmatprep.subr.mxu0 0.0
    %186 = vmatpush1.msra.mxu0 %v142
    %187 = vmatprep.subr.mxu0 0.0
    %188 = vmatpush1.msra.mxu0 %v141
    %189 = vmatprep.subr.mxu0 0.0
    %190 = vmatpush1.msra.mxu0 %v140
    %191 = vmatprep.subr.mxu0 0.0
    %192 = vmatpush1.msra.mxu0 %v139
    %193 = vmatprep.subr.mxu0 0.0
    %194 = vmatpush1.msra.mxu0 %v138
    %195 = vmatprep.subr.mxu0 0.0
    %196 = vmatpush2.msra.mxu0 0.0
    %197 = vmatprep.subr.mxu0 0.0
    %198 = vmatpush2.msra.mxu0 0.0
    %199 = vmatprep.subr.mxu0 0.0
    %200 = vmatpush2.msra.mxu0 0.0
    %201 = vmatprep.subr.mxu0 0.0
    %202 = vmatpush2.msra.mxu0 0.0
    %203 = vmatprep.subr.mxu0 0.0
    %204 = vmatpush2.msra.mxu0 0.0
    %205 = vmatprep.subr.mxu0 0.0
    %206 = vmatpush2.msra.mxu0 0.0
    %207 = vmatprep.subr.mxu0 0.0
    %208 = vmatpush2.msra.mxu0 0.0
    %209 = vmatprep.subr.mxu0 0.0
    %210 = vmatpush2.msra.mxu0 0.0
    %211 = vmatprep.subr.mxu0 0.0
    %212 = vmatpush2.msra.mxu0 0.0
    %213 = vmatprep.subr.mxu0 0.0
    %214 = vmatpush2.msra.mxu0 0.0
    %215 = vmatprep.subr.mxu0 0.0
    %216 = vmatpush2.msra.mxu0 0.0
    %217 = vmatprep.subr.mxu0 0.0
    %218 = vmatpush2.msra.mxu0 0.0
    %219 = vmatprep.subr.mxu0 0.0
    %220 = vmatpush2.msra.mxu0 0.0
    %221 = vmatprep.subr.mxu0 0.0
    %222 = vmatpush2.msra.mxu0 0.0
    %223 = vmatprep.subr.mxu0 0.0
    %224 = vmatpush2.msra.mxu0 0.0
    %225 = vmatprep.subr.mxu0 0.0
    %226 = vmatpush2.msra.mxu0 0.0
    %227 = vmatprep.mubr.f32.mxu0 0.0
    %228 = vmatmul.mubr.f32.gmra.mxu0 %v158
    %v229 = vpop.f32.mrf.mxu0
    %v230 = vadd.f32 %v154, %v229
    %v231 = vpop.f32.mrf.mxu0
    %232 = vmatprep.mubr.f32.mxu0 0.0
    %233 = vmatmul.mubr.f32.gmra.mxu0 %v161
    %v234 = vpop.f32.mrf.mxu0
    %v235 = vadd.f32 %v154, %v234
    %v236 = vpop.f32.mrf.mxu0
    %237 = vdwg.mxu0
    %v238 = vmax.f32 %v230, 0.0
    %v239 = vmax.f32 %v235, 0.0
    %v240 = vld [vmem:[%s4] sm:$0x1]
    %v241 = vld [vmem:[%s5] sm:$0x1]
    %v242 = vsel %vm132, %v238, 0.0
    %243 = vadd.xlane.f32.xlu0 %v242
    %v244 = vpop.xlane.xlu0 %243
    %v245 = vsel %vm132, %v239, 0.0
    %246 = vadd.xlane.f32.xlu0 %v245
    %v247 = vpop.xlane.xlu0 %246
    %v248 = vrcp.pop 32.0
    %v249 = vmul.f32 %v244, %v248
    %v250 = vmul.f32 %v247, %v248
    %v251 = vsub.f32 %v238, %v249
    %v252 = vsub.f32 %v239, %v250
    %v253 = vmul.f32 %v251, %v251
    %v254 = vmul.f32 %v252, %v252
    %v255 = vsel %vm132, %v253, 0.0
    %256 = vadd.xlane.f32.xlu0 %v255
    %v257 = vpop.xlane.xlu0 %256
    %v258 = vsel %vm132, %v254, 0.0
    %259 = vadd.xlane.f32.xlu0 %v258
    %v260 = vpop.xlane.xlu0 %259
    %v261 = vmul.f32 %v257, %v248
    %v262 = vmul.f32 %v260, %v248
    %v263 = vadd.f32 %v261, 1e-05
    %v264 = vadd.f32 %v262, 1e-05
    %v265 = vrsqrt.pop %v263
    %v266 = vrsqrt.pop %v264
    %v267 = vmul.f32 %v251, %v265
    %v268 = vmul.f32 %v252, %v266
    %v270 = vlaneseq
    %v271 = vshrl.u32 %v270, 7
    %v272 = vsub.s32 0, %v271
    %v273 = vrot.slane %v240, %v272
    %v275 = vmul.f32 %v267, %v273
    %v276 = vmul.f32 %v268, %v273
    %v278 = vlaneseq
    %v279 = vshrl.u32 %v278, 7
    %v280 = vsub.s32 0, %v279
    %v281 = vrot.slane %v241, %v280
    %v283 = vadd.f32 %v275, %v281
    %v284 = vadd.f32 %v276, %v281
    %v285 = vld [vmem:[%s7] sm:$0x1]
    %v286 = vrot.slane %v283, 7
    %v287 = vrot.slane %v284, 7
    %v288 = vsel %vm80, %v286, %v287
    %v289 = vsel %vm80, %v287, %v286
    %v290 = vsel %vm93, %v289, 0.0
    %v291 = vsel %vm94, %v288, 0.0
    %v292 = vrot.slane %v283, 1
    %v293 = vrot.slane %v284, 1
    %v294 = vsel %vm99, %v292, %v293
    %v295 = vsel %vm99, %v293, %v292
    %v296 = vsel %vm112, %v294, 0.0
    %v297 = vsel %vm113, %v295, 0.0
    %300 = vrot.lane.b32.xlu0 %v283, 32
    %v301 = vpop.permute.xlu0 %300
    %302 = vrot.lane.b32.xlu0 %v284, 32
    %v303 = vpop.permute.xlu0 %302
    %308 = vrot.lane.b32.xlu0 %v296, 64
    %v309 = vpop.permute.xlu0 %308
    %310 = vrot.lane.b32.xlu0 %v297, 64
    %v311 = vpop.permute.xlu0 %310
    %v314 = vsel %vm132, %v290, %v301
    %v315 = vsel %vm132, %v291, %v303
    %v316 = vsel %vm135, %v314, %v309
    %v317 = vsel %vm135, %v315, %v311
    %v318 = vld [vmem:[%s6] sm:$0xff]
    %v319 = vld [vmem:[%s6 + $0x8] sm:$0xff]
    %v320 = vld [vmem:[%s6 + $0x10] sm:$0xff]
    %v321 = vld [vmem:[%s6 + $0x18] sm:$0xff]
    %v322 = vld [vmem:[%s6 + $0x20] sm:$0xff]
    %v323 = vld [vmem:[%s6 + $0x28] sm:$0xff]
    %v324 = vld [vmem:[%s6 + $0x30] sm:$0xff]
    %v325 = vld [vmem:[%s6 + $0x38] sm:$0xff]
    %v326 = vld [vmem:[%s6 + $0x40] sm:$0xff]
    %v327 = vld [vmem:[%s6 + $0x48] sm:$0xff]
    %v328 = vld [vmem:[%s6 + $0x50] sm:$0xff]
    %v329 = vld [vmem:[%s6 + $0x58] sm:$0xff]
    %v331 = vlaneseq
    %v332 = vshrl.u32 %v331, 7
    %v333 = vsub.s32 0, %v332
    %v334 = vrot.slane %v285, %v333
    %v337 = vsel %vm156, %v316, 0
    %v340 = vsel %vm156, %v317, 0
    %342 = vmatprep.subr.mxu0 0.0
    %343 = vmatpush1.msra.mxu0 0.0
    %344 = vmatprep.subr.mxu0 0.0
    %345 = vmatpush1.msra.mxu0 0.0
    %346 = vmatprep.subr.mxu0 0.0
    %347 = vmatpush1.msra.mxu0 0.0
    %348 = vmatprep.subr.mxu0 0.0
    %349 = vmatpush1.msra.mxu0 0.0
    %350 = vmatprep.subr.mxu0 0.0
    %351 = vmatpush1.msra.mxu0 %v329
    %352 = vmatprep.subr.mxu0 0.0
    %353 = vmatpush1.msra.mxu0 %v328
    %354 = vmatprep.subr.mxu0 0.0
    %355 = vmatpush1.msra.mxu0 %v327
    %356 = vmatprep.subr.mxu0 0.0
    %357 = vmatpush1.msra.mxu0 %v326
    %358 = vmatprep.subr.mxu0 0.0
    %359 = vmatpush1.msra.mxu0 %v325
    %360 = vmatprep.subr.mxu0 0.0
    %361 = vmatpush1.msra.mxu0 %v324
    %362 = vmatprep.subr.mxu0 0.0
    %363 = vmatpush1.msra.mxu0 %v323
    %364 = vmatprep.subr.mxu0 0.0
    %365 = vmatpush1.msra.mxu0 %v322
    %366 = vmatprep.subr.mxu0 0.0
    %367 = vmatpush1.msra.mxu0 %v321
    %368 = vmatprep.subr.mxu0 0.0
    %369 = vmatpush1.msra.mxu0 %v320
    %370 = vmatprep.subr.mxu0 0.0
    %371 = vmatpush1.msra.mxu0 %v319
    %372 = vmatprep.subr.mxu0 0.0
    %373 = vmatpush1.msra.mxu0 %v318
    %374 = vmatprep.subr.mxu0 0.0
    %375 = vmatpush2.msra.mxu0 0.0
    %376 = vmatprep.subr.mxu0 0.0
    %377 = vmatpush2.msra.mxu0 0.0
    %378 = vmatprep.subr.mxu0 0.0
    %379 = vmatpush2.msra.mxu0 0.0
    %380 = vmatprep.subr.mxu0 0.0
    %381 = vmatpush2.msra.mxu0 0.0
    %382 = vmatprep.subr.mxu0 0.0
    %383 = vmatpush2.msra.mxu0 0.0
    %384 = vmatprep.subr.mxu0 0.0
    %385 = vmatpush2.msra.mxu0 0.0
    %386 = vmatprep.subr.mxu0 0.0
    %387 = vmatpush2.msra.mxu0 0.0
    %388 = vmatprep.subr.mxu0 0.0
    %389 = vmatpush2.msra.mxu0 0.0
    %390 = vmatprep.subr.mxu0 0.0
    %391 = vmatpush2.msra.mxu0 0.0
    %392 = vmatprep.subr.mxu0 0.0
    %393 = vmatpush2.msra.mxu0 0.0
    %394 = vmatprep.subr.mxu0 0.0
    %395 = vmatpush2.msra.mxu0 0.0
    %396 = vmatprep.subr.mxu0 0.0
    %397 = vmatpush2.msra.mxu0 0.0
    %398 = vmatprep.subr.mxu0 0.0
    %399 = vmatpush2.msra.mxu0 0.0
    %400 = vmatprep.subr.mxu0 0.0
    %401 = vmatpush2.msra.mxu0 0.0
    %402 = vmatprep.subr.mxu0 0.0
    %403 = vmatpush2.msra.mxu0 0.0
    %404 = vmatprep.subr.mxu0 0.0
    %405 = vmatpush2.msra.mxu0 0.0
    %406 = vmatprep.mubr.f32.mxu0 0.0
    %407 = vmatmul.mubr.f32.gmra.mxu0 %v337
    %v408 = vpop.f32.mrf.mxu0
    %v409 = vadd.f32 %v334, %v408
    %v410 = vpop.f32.mrf.mxu0
    %411 = vmatprep.mubr.f32.mxu0 0.0
    %412 = vmatmul.mubr.f32.gmra.mxu0 %v340
    %v413 = vpop.f32.mrf.mxu0
    %v414 = vadd.f32 %v334, %v413
    %v415 = vpop.f32.mrf.mxu0
    %416 = vdwg.mxu0
    %v417 = vmax.f32 %v409, 0.0
    %v418 = vmax.f32 %v414, 0.0
    %v419 = vld [vmem:[%s8] sm:$0x1]
    %v420 = vld [vmem:[%s9] sm:$0x1]
    %v421 = vsel %vm132, %v417, 0.0
    %422 = vadd.xlane.f32.xlu0 %v421
    %v423 = vpop.xlane.xlu0 %422
    %v424 = vsel %vm132, %v418, 0.0
    %425 = vadd.xlane.f32.xlu0 %v424
    %v426 = vpop.xlane.xlu0 %425
    %v427 = vmul.f32 %v423, %v248
    %v428 = vmul.f32 %v426, %v248
    %v429 = vsub.f32 %v417, %v427
    %v430 = vsub.f32 %v418, %v428
    %v431 = vmul.f32 %v429, %v429
    %v432 = vmul.f32 %v430, %v430
    %v433 = vsel %vm132, %v431, 0.0
    %434 = vadd.xlane.f32.xlu0 %v433
    %v435 = vpop.xlane.xlu0 %434
    %v436 = vsel %vm132, %v432, 0.0
    %437 = vadd.xlane.f32.xlu0 %v436
    %v438 = vpop.xlane.xlu0 %437
    %v439 = vmul.f32 %v435, %v248
    %v440 = vmul.f32 %v438, %v248
    %v441 = vadd.f32 %v439, 1e-05
    %v442 = vadd.f32 %v440, 1e-05
    %v443 = vrsqrt.pop %v441
    %v444 = vrsqrt.pop %v442
    %v445 = vmul.f32 %v429, %v443
    %v446 = vmul.f32 %v430, %v444
    %v448 = vlaneseq
    %v449 = vshrl.u32 %v448, 7
    %v450 = vsub.s32 0, %v449
    %v451 = vrot.slane %v419, %v450
    %v453 = vmul.f32 %v445, %v451
    %v454 = vmul.f32 %v446, %v451
    %v456 = vlaneseq
    %v457 = vshrl.u32 %v456, 7
    %v458 = vsub.s32 0, %v457
    %v459 = vrot.slane %v420, %v458
    %v461 = vadd.f32 %v453, %v459
    %v462 = vadd.f32 %v454, %v459
    %v463 = vld [vmem:[%s10] sm:$0x1]
    %v465 = vlaneseq
    %v466 = vshrl.u32 %v465, 7
    %v467 = vsub.s32 0, %v466
    %v468 = vrot.slane %v463, %v467
    %v470 = vmul.f32 %v461, %v468
    %v471 = vmul.f32 %v462, %v468
    %v472 = vsel %vm132, %v470, 0.0
    %473 = vadd.xlane.f32.xlu0 %v472
    %v474 = vpop.xlane.xlu0 %473
    %v475 = vsel %vm132, %v471, 0.0
    %476 = vadd.xlane.f32.xlu0 %v475
    %v477 = vpop.xlane.xlu0 %476
    %v478 = vld [vmem:[#allocation4] sm:$0x1]
    %v480 = vlaneseq
    %v481 = vshrl.u32 %v480, 7
    %v482 = vsub.s32 0, %v481
    %v483 = vrot.slane %v478, %v482
    %484 = vset.pattern.permute.xlu0 0
    %485 = vperm.xlu0 %484, %v483
    %v486 = vpop.permute.xlu0 %485
    %v488 = vadd.f32 %v474, %v486
    %v489 = vadd.f32 %v477, %v486
    %v490 = vlaneseq
    %v491 = vand.u32 %v490, 127
    %vm492 = vcmp.eq.s32.totalorder %v51, 0
    %s493 = smul.u32 0, 2
    %s494 = sld [smem:[#allocation3 + %s493]]
    %v495 = vstv %s494
    %v496 = vsel %vm492, %v495, 0
    %vm497 = vcmp.eq.s32.totalorder %v51, 1
    %s498 = sadd.s32 %s493, 1
    %s499 = sld [smem:[#allocation3 + %s498]]
    %v500 = vstv %s499
    %v501 = vsel %vm497, %v500, %v496
    %vm502 = vcmp.ge.s32.totalorder %v491, %v501
    %v505 = vlaneseq
    %v506 = vshrl.u32 %v505, 7
    %v507 = vsub.s32 %v491, %v506
    %v508 = vrot.slane %v488, %v507
    %v509 = vlaneseq
    %v510 = vshrl.u32 %v509, 7
    %v511 = vsub.s32 %v491, %v510
    %v512 = vrot.slane %v489, %v511
    %vm513 = vcmask 1041409
    %v514 = vsel %vm513, %v512, %v508
    %v516 = vsel %vm502, 0.0, %v514
    %vm517 = vcmask 58368
    %518 = vst.msk [vmem:[#allocation5] sm:$0x3] %vm517, %v516
    // Predicated region
    $region46: #{tpu_custom_call.1} parent=1 // pred_check
      _
    $region47: #{tpu_custom_call.1} parent=1 // pred_check_branch
      %520 = sbr.rel (0) target = $region49
    $region48: #{tpu_custom_call.1} parent=1 // pred_region
      %s522 = ssub.s32 32, 32
      %523 = vsyncadd [#allocation6], %s522
      %s525 = sshll.u32 [#allocation5], 4
      %s526 = int_to_ptr.vmem [resolvable:$true] %s525
      %528 = dma.vmem_to_hbm [thread:$0]  %s526, 32, %s12, [#allocation6]
    $region49: #{tpu_custom_call.1} parent=1 // pred_fallthru
      _
    // Predicated region
    $region50: #{tpu_custom_call.1} parent=1 // pred_check
      _
    $region51: #{tpu_custom_call.1} parent=1 // pred_check_branch
      %530 = sbr.rel (0) target = $region53
    $region52: #{tpu_custom_call.1} parent=1 // pred_region
      %531 = dma.done [#allocation6], 32
    $region53: #{tpu_custom_call.1} parent=1 // pred_fallthru
      _
    %532 = vsyncpa [#allocation6], 1

</llo_original>
